<compile_context>
chip_gen: v6e
topology: v6e:2x2x1
jax: 0.10.0
libtpu: 0.0.40
codegen_flags: <defaults>
</compile_context>

<pallas_src>
import math

import jax
import jax.numpy as jnp
from jax.experimental import pallas as pl
from jax.experimental.pallas import tpu as pltpu

X_PARAM = 4                 # the `x` passed to Model.__init__
IN_FEATURES = X_PARAM ** 2  # 16
OUT_FEATURES = X_PARAM      # 4


def _round_up(v, m):
    return (v + m - 1) // m * m


def _fused_linear_add_relu_kernel(x_ref, wt_ref, b_ref, x2_ref, o_ref):
    # x_ref:  (tm, K)            input rows for this grid step
    # wt_ref: (K, N)             full transposed weight (resident across steps)
    # b_ref:  (1, N)             full bias (resident)
    # x2_ref: (tm, N) or (1, N)  residual; (1, N) is broadcast on the VPU
    # o_ref:  (tm, N)            output rows
    acc = jnp.dot(x_ref[...], wt_ref[...], preferred_element_type=jnp.float32)
    acc = acc + b_ref[...] + x2_ref[...]
    o_ref[...] = jnp.maximum(acc, 0.0).astype(o_ref.dtype)


def fused_linear_add_relu(x1, weight, bias, x2, *, max_tile_rows=512):
    """relu(x1 @ weight.T + bias + x2), linear over the last dim of x1.

    Perf-review-driven structure:
      * grid collapses to (1,) for small M (no per-step pipeline overhead),
      * >=512-row tiles when M grows (near HBM roofline, << any VMEM limit),
      * fully-broadcast x2 is NOT materialized wrapper-side,
      * ragged M handled by zero-padding the last tile (sliced off after).
    Note: the lane-dense output repack (N=4 -> 128-lane rows) is intentionally
    omitted; at these sizes the store is a single masked vst and the in-kernel
    cross-lane reshape is not worth the lowering risk.
    """
    lead = x1.shape[:-1]
    K = x1.shape[-1]
    N, Kw = weight.shape
    assert Kw == K, "weight in_features must match x1 last dim"

    out_shape = jnp.broadcast_shapes(lead + (N,), jnp.shape(x2))
    assert out_shape == lead + (N,), (
        "x2 may only broadcast against the linear output, not expand it")

    x2d = x1.reshape(-1, K)
    M = x2d.shape[0]

    # Residual: keep it as a single resident row when it is fully broadcast.
    x2_arr = jnp.asarray(x2)
    if x2_arr.size == N and (x2_arr.ndim == 0 or x2_arr.shape[-1] == N):
        x2_2d = x2_arr.reshape(1, N)
        x2_full = False
    else:
        # TODO(synk): partial broadcasts (e.g. (1, seq, N)) are still
        # materialized wrapper-side; a per-axis index_map could avoid it.
        x2_2d = jnp.broadcast_to(x2_arr, lead + (N,)).reshape(-1, N)
        x2_full = True

    # Row tile: one block if everything fits, otherwise large >=512-row tiles.
    tm = min(_round_up(max(M, 1), 8), _round_up(max_tile_rows, 8))
    M_pad = _round_up(max(M, 1), tm)
    if M_pad != M:
        x2d = jnp.pad(x2d, ((0, M_pad - M), (0, 0)))
        if x2_full:
            x2_2d = jnp.pad(x2_2d, ((0, M_pad - M), (0, 0)))
    grid = (M_pad // tm,)

    wt = weight.T                      # (K, N), resident for the whole grid
    b2d = bias.reshape(1, N)           # (1, N)

    if x2_full:
        x2_spec = pl.BlockSpec((tm, N), lambda i: (i, 0))
    else:
        x2_spec = pl.BlockSpec((1, N), lambda i: (0, 0))

    out2d = pl.pallas_call(
        _fused_linear_add_relu_kernel,
        out_shape=jax.ShapeDtypeStruct((M_pad, N), x1.dtype),
        grid_spec=pltpu.PrefetchScalarGridSpec(
            num_scalar_prefetch=0,
            grid=grid,
            in_specs=[
                pl.BlockSpec((tm, K), lambda i: (i, 0)),   # x rows
                pl.BlockSpec((K, N), lambda i: (0, 0)),    # weight^T (resident)
                pl.BlockSpec((1, N), lambda i: (0, 0)),    # bias (resident)
                x2_spec,                                   # residual
            ],
            out_specs=pl.BlockSpec((tm, N), lambda i: (i, 0)),
        ),
        compiler_params=pltpu.CompilerParams(
            dimension_semantics=("parallel",)),
    )(x2d, wt, b2d, x2_2d)

    return out2d[:M].reshape(lead + (N,))


if __name__ == "__main__":
    key = jax.random.PRNGKey(0)
    k_x1, k_x2, k_w, k_b = jax.random.split(key, 4)

    # Small shapes consistent with the forward:
    #   x1: (batch, seq, in_features) = (2, 8, 16)
    #   x2: residual broadcastable with the linear output (2, 8, 4)
    x1 = jax.random.normal(k_x1, (2, 8, IN_FEATURES), dtype=jnp.float32)
    x2 = jax.random.normal(k_x2, (2, 8, OUT_FEATURES), dtype=jnp.float32)

    # Deterministic "Linear" parameters (synthetic, not a checkpoint).
    bound = 1.0 / math.sqrt(IN_FEATURES)
    weight = jax.random.uniform(
        k_w, (OUT_FEATURES, IN_FEATURES), minval=-bound, maxval=bound,
        dtype=jnp.float32)
    bias = jax.random.uniform(
        k_b, (OUT_FEATURES,), minval=-bound, maxval=bound, dtype=jnp.float32)

    # Case 1: full residual (matches output shape) — single grid step.
    out = jax.block_until_ready(fused_linear_add_relu(x1, weight, bias, x2))
    ref = jnp.maximum(jnp.einsum("bsk,nk->bsn", x1, weight) + bias + x2, 0.0)
    assert out.shape == (2, 8, OUT_FEATURES)
    assert jnp.allclose(out, ref, atol=1e-5, rtol=1e-5)

    # Case 2: fully-broadcast residual (shape (N,)) — no wrapper-side
    # materialization, broadcast happens on the VPU inside the kernel.
    x2_row = jax.random.normal(k_x2, (OUT_FEATURES,), dtype=jnp.float32)
    out2 = jax.block_until_ready(
        fused_linear_add_relu(x1, weight, bias, x2_row))
    ref2 = jnp.maximum(
        jnp.einsum("bsk,nk->bsn", x1, weight) + bias + x2_row, 0.0)
    assert jnp.allclose(out2, ref2, atol=1e-5, rtol=1e-5)

    print("KERNEL_OK")
</pallas_src>

<mosaic_0001>
module attributes {stable_mosaic.version = 11 : i64} {
  func.func @_fused_linear_add_relu_kernel(%arg0: i32, %arg1: memref<16x16xf32, #tpu.memory_space<vmem>>, %arg2: memref<16x4xf32, #tpu.memory_space<vmem>>, %arg3: memref<1x4xf32, #tpu.memory_space<vmem>>, %arg4: memref<16x4xf32, #tpu.memory_space<vmem>>, %arg5: memref<16x4xf32, #tpu.memory_space<vmem>>) attributes {dimension_semantics = [#tpu.dimension_semantics<parallel>], iteration_bounds = array<i64: 1>, scalar_prefetch = 0 : i64, scratch_operands = 0 : i64, tpu.core_type = #tpu.core_type<tc>, window_params = [{transform_indices = @transform_0, window_bounds = array<i64: 16, 16>}, {pipeline_mode = #tpu.pipeline_mode<synchronous>, transform_indices = @transform_1, window_bounds = array<i64: 16, 4>}, {pipeline_mode = #tpu.pipeline_mode<synchronous>, transform_indices = @transform_2, window_bounds = array<i64: 1, 4>}, {transform_indices = @transform_3, window_bounds = array<i64: 16, 4>}, {transform_indices = @transform_4, window_bounds = array<i64: 16, 4>}]} {
    %c0 = arith.constant 0 : index
    %c0_0 = arith.constant 0 : index
    %0 = vector.load %arg1[%c0, %c0_0] : memref<16x16xf32, #tpu.memory_space<vmem>>, vector<16x16xf32>
    %c0_1 = arith.constant 0 : index
    %c0_2 = arith.constant 0 : index
    %1 = vector.load %arg2[%c0_1, %c0_2] : memref<16x4xf32, #tpu.memory_space<vmem>>, vector<16x4xf32>
    %cst = arith.constant dense<0.000000e+00> : vector<16x4xf32>
    %2 = tpu.matmul %0, %1, %cst {dimension_numbers = #tpu.dot_dimension_numbers<[1], [0], [0], [1], [0, 0, 1, 1], [], []>} : vector<16x16xf32>, vector<16x4xf32>, vector<16x4xf32> -> vector<16x4xf32>
    %c0_3 = arith.constant 0 : index
    %c0_4 = arith.constant 0 : index
    %3 = vector.load %arg3[%c0_3, %c0_4] : memref<1x4xf32, #tpu.memory_space<vmem>>, vector<1x4xf32>
    %4 = vector.broadcast %3 : vector<1x4xf32> to vector<16x4xf32>
    %5 = arith.addf %2, %4 : vector<16x4xf32>
    %c0_5 = arith.constant 0 : index
    %c0_6 = arith.constant 0 : index
    %6 = vector.load %arg4[%c0_5, %c0_6] : memref<16x4xf32, #tpu.memory_space<vmem>>, vector<16x4xf32>
    %7 = arith.addf %5, %6 : vector<16x4xf32>
    %cst_7 = arith.constant 0.000000e+00 : f32
    %8 = vector.broadcast %cst_7 : f32 to vector<16x4xf32>
    %9 = arith.maximumf %7, %8 : vector<16x4xf32>
    %c0_8 = arith.constant 0 : index
    %c0_9 = arith.constant 0 : index
    %10 = vector.load %arg5[%c0_8, %c0_9] : memref<16x4xf32, #tpu.memory_space<vmem>>, vector<16x4xf32>
    tpu.vector_store %arg5[%c0_8, %c0_9], %9 {strides = array<i32>} : memref<16x4xf32, #tpu.memory_space<vmem>>, vector<16x4xf32>,
    return
  }
  func.func @transform_0(%arg0: i32) -> (i32, i32) {
    %c0_i32 = arith.constant 0 : i32
    %c0_i32_0 = arith.constant 0 : i32
    return %arg0, %c0_i32 : i32, i32
  }
  func.func @transform_1(%arg0: i32) -> (i32, i32) {
    %c0_i32 = arith.constant 0 : i32
    %c0_i32_0 = arith.constant 0 : i32
    %c0_i32_1 = arith.constant 0 : i32
    return %c0_i32, %c0_i32_0 : i32, i32
  }
  func.func @transform_2(%arg0: i32) -> (i32, i32) {
    %c0_i32 = arith.constant 0 : i32
    %c0_i32_0 = arith.constant 0 : i32
    %c0_i32_1 = arith.constant 0 : i32
    return %c0_i32, %c0_i32_0 : i32, i32
  }
  func.func @transform_3(%arg0: i32) -> (i32, i32) {
    %c0_i32 = arith.constant 0 : i32
    %c0_i32_0 = arith.constant 0 : i32
    return %arg0, %c0_i32 : i32, i32
  }
  func.func @transform_4(%arg0: i32) -> (i32, i32) {
    %c0_i32 = arith.constant 0 : i32
    %c0_i32_0 = arith.constant 0 : i32
    return %arg0, %c0_i32 : i32, i32
  }
}

</mosaic_0001>

<llo_original>
// kernel: tpu_custom_call.1
$region0: #{tpu_custom_call.1}
  #allocation0 [shape = 'u32[]', space=smem, size = 0x4, offset = 0x4, fixed_abs, tag = 'smem constant byte address 0x4 - core index']
  #allocation1 [shape = 'u32[144,128]{1,0:T(1,128)}', space=vmem, size = 0x12000, scoped, tag = 'internal scratch']
  %s0 = inlined_call_operand.vmem [shape: f32[16,16], index: 0, kind: input, shape index: {}]
  %s1 = inlined_call_operand.vmem [shape: f32[16,4], index: 1, kind: input, shape index: {}]
  %s2 = inlined_call_operand.vmem [shape: f32[1,4], index: 2, kind: input, shape index: {}]
  %s3 = inlined_call_operand.vmem [shape: f32[16,4], index: 3, kind: input, shape index: {}]
  %s4 = inlined_call_operand.vmem [shape: f32[16,4], index: 4, kind: output, shape index: {}]
  %s5 = sld [smem:[#allocation0]]
  $region26: #{tpu_custom_call.1} parent=0
    _
  %s7 = ssub.s32 1, %s5
  %s8 = scalar_select 0, %s7, %s5
  // Predicated region
  $region2: #{tpu_custom_call.1} parent=0 // pred_check
    _
  $region3: #{tpu_custom_call.1} parent=0 // pred_check_branch
    %10 = sbr.rel (0) target = $region5
  $region4: #{tpu_custom_call.1} parent=0 // pred_region
    _
  $region5: #{tpu_custom_call.1} parent=0 // pred_fallthru
    _
  // Predicated region
  $region6: #{tpu_custom_call.1} parent=0 // pred_check
    _
  $region7: #{tpu_custom_call.1} parent=0 // pred_check_branch
    %12 = sbr.rel (0) target = $region9
  $region8: #{tpu_custom_call.1} parent=0 // pred_region
    _
  $region9: #{tpu_custom_call.1} parent=0 // pred_fallthru
    _
  // Predicated region
  $region10: #{tpu_custom_call.1} parent=0 // pred_check
    _
  $region11: #{tpu_custom_call.1} parent=0 // pred_check_branch
    %14 = sbr.rel (0) target = $region13
  $region12: #{tpu_custom_call.1} parent=0 // pred_region
    _
  $region13: #{tpu_custom_call.1} parent=0 // pred_fallthru
    _
  // Predicated region
  $region14: #{tpu_custom_call.1} parent=0 // pred_check
    _
  $region15: #{tpu_custom_call.1} parent=0 // pred_check_branch
    %16 = sbr.rel (0) target = $region17
  $region16: #{tpu_custom_call.1} parent=0 // pred_region
    _
  $region17: #{tpu_custom_call.1} parent=0 // pred_fallthru
    _
  %v17 = vld [vmem:[%s0] sm:$0xff]
  %v18 = vld [vmem:[%s0 + $0x8] sm:$0xff]
  %v19 = vld [vmem:[%s1] sm:$0xff]
  %v20 = vld [vmem:[%s1 + $0x8] sm:$0xff]
  %v21 = vld [vmem:[%s2] sm:$0x1]
  %v23 = vlaneseq
  %v24 = vshrl.u32 %v23, 7
  %v25 = vsub.s32 0, %v24
  %v26 = vrot.slane %v21, %v25
  %vm28 = vcmask 130048
  %v30 = vsel %vm28, %v17, 0
  %v33 = vsel %vm28, %v18, 0
  %35 = vmatprep.subr.mxu0 0.0
  %36 = vmatpush1.msra.mxu0 0.0
  %37 = vmatprep.subr.mxu0 0.0
  %38 = vmatpush1.msra.mxu0 0.0
  %39 = vmatprep.subr.mxu0 0.0
  %40 = vmatpush1.msra.mxu0 0.0
  %41 = vmatprep.subr.mxu0 0.0
  %42 = vmatpush1.msra.mxu0 0.0
  %43 = vmatprep.subr.mxu0 0.0
  %44 = vmatpush1.msra.mxu0 0.0
  %45 = vmatprep.subr.mxu0 0.0
  %46 = vmatpush1.msra.mxu0 0.0
  %47 = vmatprep.subr.mxu0 0.0
  %48 = vmatpush1.msra.mxu0 0.0
  %49 = vmatprep.subr.mxu0 0.0
  %50 = vmatpush1.msra.mxu0 0.0
  %51 = vmatprep.subr.mxu0 0.0
  %52 = vmatpush1.msra.mxu0 0.0
  %53 = vmatprep.subr.mxu0 0.0
  %54 = vmatpush1.msra.mxu0 0.0
  %55 = vmatprep.subr.mxu0 0.0
  %56 = vmatpush1.msra.mxu0 0.0
  %57 = vmatprep.subr.mxu0 0.0
  %58 = vmatpush1.msra.mxu0 0.0
  %59 = vmatprep.subr.mxu0 0.0
  %60 = vmatpush1.msra.mxu0 0.0
  %61 = vmatprep.subr.mxu0 0.0
  %62 = vmatpush1.msra.mxu0 0.0
  %63 = vmatprep.subr.mxu0 0.0
  %64 = vmatpush1.msra.mxu0 %v20
  %65 = vmatprep.subr.mxu0 0.0
  %66 = vmatpush1.msra.mxu0 %v19
  %67 = vmatprep.subr.mxu0 0.0
  %68 = vmatpush2.msra.mxu0 0.0
  %69 = vmatprep.subr.mxu0 0.0
  %70 = vmatpush2.msra.mxu0 0.0
  %71 = vmatprep.subr.mxu0 0.0
  %72 = vmatpush2.msra.mxu0 0.0
  %73 = vmatprep.subr.mxu0 0.0
  %74 = vmatpush2.msra.mxu0 0.0
  %75 = vmatprep.subr.mxu0 0.0
  %76 = vmatpush2.msra.mxu0 0.0
  %77 = vmatprep.subr.mxu0 0.0
  %78 = vmatpush2.msra.mxu0 0.0
  %79 = vmatprep.subr.mxu0 0.0
  %80 = vmatpush2.msra.mxu0 0.0
  %81 = vmatprep.subr.mxu0 0.0
  %82 = vmatpush2.msra.mxu0 0.0
  %83 = vmatprep.subr.mxu0 0.0
  %84 = vmatpush2.msra.mxu0 0.0
  %85 = vmatprep.subr.mxu0 0.0
  %86 = vmatpush2.msra.mxu0 0.0
  %87 = vmatprep.subr.mxu0 0.0
  %88 = vmatpush2.msra.mxu0 0.0
  %89 = vmatprep.subr.mxu0 0.0
  %90 = vmatpush2.msra.mxu0 0.0
  %91 = vmatprep.subr.mxu0 0.0
  %92 = vmatpush2.msra.mxu0 0.0
  %93 = vmatprep.subr.mxu0 0.0
  %94 = vmatpush2.msra.mxu0 0.0
  %95 = vmatprep.subr.mxu0 0.0
  %96 = vmatpush2.msra.mxu0 0.0
  %97 = vmatprep.subr.mxu0 0.0
  %98 = vmatpush2.msra.mxu0 0.0
  %99 = vmatprep.mubr.f32.mxu0 0.0
  %100 = vmatmul.mubr.f32.gmra.mxu0 %v30
  %v101 = vpop.f32.mrf.mxu0
  %v102 = vadd.f32 %v26, %v101
  %v103 = vpop.f32.mrf.mxu0
  %104 = vmatprep.mubr.f32.mxu0 0.0
  %105 = vmatmul.mubr.f32.gmra.mxu0 %v33
  %v106 = vpop.f32.mrf.mxu0
  %v107 = vadd.f32 %v26, %v106
  %v108 = vpop.f32.mrf.mxu0
  %109 = vdwg.mxu0
  %v110 = vld [vmem:[%s3] sm:$0xff]
  %v111 = vld [vmem:[%s3 + $0x8] sm:$0xff]
  %v112 = vadd.f32 %v102, %v110
  %v113 = vadd.f32 %v107, %v111
  %v114 = vmax.f32 %v112, 0.0
  %v115 = vmax.f32 %v113, 0.0
  %vm116 = vcmask 31744
  %117 = vst.msk [vmem:[%s4] sm:$0xff] %vm116, %v114
  %118 = vst.msk [vmem:[%s4 + $0x8] sm:$0xff] %vm116, %v115
  // Predicated region
  $region18: #{tpu_custom_call.1} parent=0 // pred_check
    _
  $region19: #{tpu_custom_call.1} parent=0 // pred_check_branch
    %120 = sbr.rel (0) target = $region21
  $region20: #{tpu_custom_call.1} parent=0 // pred_region
    _
  $region21: #{tpu_custom_call.1} parent=0 // pred_fallthru
    _
  // Predicated region
  $region22: #{tpu_custom_call.1} parent=0 // pred_check
    _
  $region23: #{tpu_custom_call.1} parent=0 // pred_check_branch
    %122 = sbr.rel (0) target = $region25
  $region24: #{tpu_custom_call.1} parent=0 // pred_region
    _
  $region25: #{tpu_custom_call.1} parent=0 // pred_fallthru
    _

</llo_original>
